<compile_context>
chip_gen: v7x
topology: tpu7x:2x2x1
jax: 0.10.0
libtpu: 0.0.40
codegen_flags: <defaults>
</compile_context>

<pallas_src>
import functools

import jax
import jax.numpy as jnp
from jax import lax
from jax.experimental import pallas as pl
from jax.experimental.pallas import tpu as pltpu


# ---------------------------------------------------------------------------
# helpers
# ---------------------------------------------------------------------------
def _round_up(x, m):
    return ((x + m - 1) // m) * m


def _pick_tile(n, max_tile=512):
    """Row-tile TM (multiple of 8; 512 is a multiple of 256 for full MXU cadence)
    and number of grid steps. Ragged tails are handled in-kernel / by masked writeback."""
    n8 = _round_up(max(n, 8), 8)
    if n8 <= max_tile:
        return n8, 1
    return max_tile, pl.cdiv(n, max_tile)


# ---------------------------------------------------------------------------
# Kernel A: support features + prototype accumulation (fused)
#   outs: prototypes (H, C_pad)  [lane-dense, feeds MXU directly]
#         ||p||^2    (1, C_pad)  [padded-class lanes = 1e30 -> class mask for free]
# ---------------------------------------------------------------------------
def _support_proto_kernel(labels_ref, x_ref, w_ref, b_ref, proto_ref, pp_ref,
                          sums_ref, counts_ref, *, n_rows, n_classes, mm_dtype):
    i = pl.program_id(0)

    @pl.when(i == 0)
    def _():
        sums_ref[...] = jnp.zeros_like(sums_ref)
        counts_ref[...] = jnp.zeros_like(counts_ref)

    tm = x_ref.shape[0]
    c_pad = sums_ref.shape[1]

    # feature projection (stand-in for feature_extractor + vsm)
    feats = jnp.tanh(
        jnp.dot(x_ref[...], w_ref[...], preferred_element_type=jnp.float32)
        + b_ref[...])                                              # (TM, H) f32

    # mask ragged-tail rows (inputs are unpadded; last block may read stale VMEM)
    row_ids = lax.broadcasted_iota(jnp.int32, (tm, 1), 0) + i * tm
    row_valid = row_ids < n_rows                                   # (TM, 1) bool
    feats = jnp.where(row_valid, feats, 0.0)

    # one-hot of labels; -1 (ignore_index) and invalid rows match no class
    cls_ids = lax.broadcasted_iota(jnp.int32, (tm, c_pad), 1)
    onehot = jnp.where(jnp.logical_and(labels_ref[...] == cls_ids, row_valid),
                       1.0, 0.0)                                   # (TM, C_pad) f32

    # per-class sums accumulated directly in (H, C_pad): contract over TM on the MXU
    sums_ref[...] += lax.dot_general(
        feats.astype(mm_dtype), onehot.astype(mm_dtype),
        dimension_numbers=(((0,), (0,)), ((), ())),
        preferred_element_type=jnp.float32)
    counts_ref[...] += jnp.sum(onehot, axis=0, keepdims=True)      # (1, C_pad)

    @pl.when(i == pl.num_programs(0) - 1)
    def _():
        protos = sums_ref[...] / jnp.maximum(counts_ref[...], 1.0)  # empty class -> 0
        protos = protos.astype(proto_ref.dtype)
        proto_ref[...] = protos
        # loop-invariant ||p||^2 row; padded-class lanes pushed to 1e30 so those
        # logits become ~-1e15 and never win softmax / argmax.
        pp = jnp.sum(protos.astype(jnp.float32) ** 2, axis=0, keepdims=True)
        lane_ids = lax.broadcasted_iota(jnp.int32, (1, c_pad), 1)
        pp_ref[...] = jnp.where(lane_ids < n_classes, pp, jnp.float32(1e30))


# ---------------------------------------------------------------------------
# Kernel B: query features + -cdist logits + per-row CE(ignore_index=-1)
#   fully parallel over row tiles (uses both TensorCores on v7x)
# ---------------------------------------------------------------------------
def _query_kernel(labels_ref, x_ref, w_ref, b_ref, proto_ref, pp_ref,
                  logits_ref, loss_ref, *, mm_dtype):
    feats = jnp.tanh(
        jnp.dot(x_ref[...], w_ref[...], preferred_element_type=jnp.float32)
        + b_ref[...])                                              # (TM, H) f32

    # euclidean distances via MXU:  d^2 = |q|^2 + |p|^2 - 2 q.p   (|p|^2 precomputed)
    qq = jnp.sum(feats * feats, axis=-1, keepdims=True)            # (TM, 1)
    qp = jnp.dot(feats.astype(mm_dtype), proto_ref[...],
                 preferred_element_type=jnp.float32)               # (TM, C_pad)
    d2 = jnp.maximum(qq + pp_ref[...] - 2.0 * qp, 0.0)
    logits = -jnp.sqrt(d2)
    logits_ref[...] = logits                                        # lane-dense store

    # per-row CrossEntropy(ignore_index=-1); the mean over valid rows is done in JAX
    tm, c_pad = logits.shape
    labels = labels_ref[...]                                        # (TM, 1) int32
    cls_ids = lax.broadcasted_iota(jnp.int32, (tm, c_pad), 1)
    onehot = jnp.where(labels == cls_ids, 1.0, 0.0)
    m = jnp.max(logits, axis=-1, keepdims=True)
    lse = m + jnp.log(jnp.sum(jnp.exp(logits - m), axis=-1, keepdims=True))
    tgt = jnp.sum(onehot * logits, axis=-1, keepdims=True)
    loss_ref[...] = jnp.where(labels != -1, lse - tgt, 0.0)         # (TM, 1)


# ---------------------------------------------------------------------------
# Episode forward: one prototypical-network step of SeqVSMNetwork.forward
# ---------------------------------------------------------------------------
def seq_vsm_episode_forward(params, support_x, support_y, query_x, query_y,
                            n_classes, use_bf16=False, max_tile=512):
    w, b = params
    E, H = w.shape
    Bs, Ss, _ = support_x.shape
    Bq, Sq, _ = query_x.shape
    Ns, Nq = Bs * Ss, Bq * Sq
    c_pad = max(128, _round_up(n_classes, 128))        # lane-dense class axis
    mm_dtype = jnp.bfloat16 if use_bf16 else jnp.float32
    in_bytes = 2 if use_bf16 else 4

    tm_s, grid_s = _pick_tile(Ns, max_tile)
    tm_q, grid_q = _pick_tile(Nq, max_tile)

    # plain reshapes / casts only -- no wrapper-side zero-pad pass over activations
    sup_x = support_x.reshape(Ns, E).astype(mm_dtype)
    qry_x = query_x.reshape(Nq, E).astype(mm_dtype)
    sup_y = support_y.reshape(Ns, 1).astype(jnp.int32)
    qry_y = query_y.reshape(Nq, 1).astype(jnp.int32)
    w_k = w.astype(mm_dtype)
    b_k = b.reshape(1, H).astype(jnp.float32)

    def vmem_limit(tm, has_logits):
        # 2x double-buffered tiles + resident W/b/protos + scratch, with 2x headroom.
        need = 2 * tm * E * in_bytes + 2 * tm * 4            # x + labels tiles
        need += 2 * E * H * in_bytes + 2 * H * 4             # resident W, b
        need += 2 * H * c_pad * in_bytes + 2 * c_pad * 4     # protos + ||p||^2
        need += H * c_pad * 4 + c_pad * 4                    # kernel-A scratch
        if has_logits:
            need += 2 * tm * c_pad * 4 + 2 * tm * 4          # logits + per-row loss
        # cap at 48 MiB: safe on v5e/v6e (128 MiB physical) and v7x (64 MiB physical)
        return int(min(48 * 1024 * 1024, max(16 * 1024 * 1024, 2 * need)))

    # ---- Kernel A: support features -> prototypes (H, C_pad) + ||p||^2 ----
    kernel_a = functools.partial(_support_proto_kernel, n_rows=Ns,
                                 n_classes=n_classes, mm_dtype=mm_dtype)
    protos_t, pp = pl.pallas_call(
        kernel_a,
        out_shape=(jax.ShapeDtypeStruct((H, c_pad), mm_dtype),
                   jax.ShapeDtypeStruct((1, c_pad), jnp.float32)),
        grid=(grid_s,),
        in_specs=[
            pl.BlockSpec((tm_s, 1), lambda i: (i, 0)),       # labels tile
            pl.BlockSpec((tm_s, E), lambda i: (i, 0)),       # x tile
            pl.BlockSpec((E, H), lambda i: (0, 0)),          # W (resident)
            pl.BlockSpec((1, H), lambda i: (0, 0)),          # b (resident)
        ],
        out_specs=(pl.BlockSpec((H, c_pad), lambda i: (0, 0)),
                   pl.BlockSpec((1, c_pad), lambda i: (0, 0))),
        scratch_shapes=[pltpu.VMEM((H, c_pad), jnp.float32),
                        pltpu.VMEM((1, c_pad), jnp.float32)],
        compiler_params=pltpu.CompilerParams(
            dimension_semantics=("arbitrary",),              # reduction over row tiles
            vmem_limit_bytes=vmem_limit(tm_s, False)),
        cost_estimate=pl.CostEstimate(
            flops=2 * Ns * E * H + 2 * Ns * H * c_pad,
            transcendentals=Ns * H,
            bytes_accessed=Ns * (E * in_bytes + 4) + E * H * in_bytes
                           + H * c_pad * in_bytes + c_pad * 4),
    )(sup_y, sup_x, w_k, b_k)

    # ---- Kernel B: query features -> logits + per-row CE (parallel tiles) ----
    kernel_b = functools.partial(_query_kernel, mm_dtype=mm_dtype)
    logits_pad, per_row_loss = pl.pallas_call(
        kernel_b,
        out_shape=(jax.ShapeDtypeStruct((Nq, c_pad), jnp.float32),
                   jax.ShapeDtypeStruct((Nq, 1), jnp.float32)),
        grid=(grid_q,),
        in_specs=[
            pl.BlockSpec((tm_q, 1), lambda i: (i, 0)),       # labels tile
            pl.BlockSpec((tm_q, E), lambda i: (i, 0)),       # x tile
            pl.BlockSpec((E, H), lambda i: (0, 0)),          # W (resident)
            pl.BlockSpec((1, H), lambda i: (0, 0)),          # b (resident)
            pl.BlockSpec((H, c_pad), lambda i: (0, 0)),      # prototypes (resident)
            pl.BlockSpec((1, c_pad), lambda i: (0, 0)),      # ||p||^2 (resident)
        ],
        out_specs=(pl.BlockSpec((tm_q, c_pad), lambda i: (i, 0)),   # lane-dense logits
                   pl.BlockSpec((tm_q, 1), lambda i: (i, 0))),      # per-row loss
        compiler_params=pltpu.CompilerParams(
            dimension_semantics=("parallel",),               # independent tiles (2 TCs)
            vmem_limit_bytes=vmem_limit(tm_q, True)),
        cost_estimate=pl.CostEstimate(
            flops=2 * Nq * E * H + 2 * Nq * H * c_pad,
            transcendentals=Nq * H + Nq * c_pad,
            bytes_accessed=Nq * (E * in_bytes + 4) + E * H * in_bytes
                           + H * c_pad * in_bytes + Nq * c_pad * 4 + Nq * 4),
    )(qry_y, qry_x, w_k, b_k, protos_t, pp)

    logits = logits_pad[:, :n_classes]
    labels_flat = query_y.reshape(-1)
    valid = labels_flat != -1
    n_valid = jnp.sum(valid.astype(jnp.float32))
    loss = jnp.sum(per_row_loss[:, 0]) / jnp.maximum(n_valid, 1.0)

    # make_prediction / accuracy on relevant (non -1) tokens  (glue)
    preds = jnp.argmax(logits, axis=-1)
    correct = jnp.sum(jnp.where(valid, (preds == labels_flat).astype(jnp.float32), 0.0))
    accuracy = correct / jnp.maximum(n_valid, 1.0)

    return loss, logits.reshape(Bq, Sq, n_classes), accuracy


# Pure-JAX reference (mirrors the PyTorch semantics) for a correctness check.
def _reference(params, support_x, support_y, query_x, query_y, n_classes):
    w, b = params
    _, _, E = support_x.shape
    sf = jnp.tanh(support_x.reshape(-1, E) @ w + b.reshape(1, -1))
    qf = jnp.tanh(query_x.reshape(-1, E) @ w + b.reshape(1, -1))
    sy = support_y.reshape(-1)
    protos = []
    for c in range(n_classes):
        mask = (sy == c).astype(jnp.float32)[:, None]
        cnt = jnp.sum(mask)
        protos.append(jnp.where(cnt > 0,
                                jnp.sum(sf * mask, axis=0) / jnp.maximum(cnt, 1.0),
                                jnp.zeros((sf.shape[1],))))
    protos = jnp.stack(protos)
    d = jnp.sqrt(jnp.maximum(
        jnp.sum(qf ** 2, -1, keepdims=True) + jnp.sum(protos ** 2, -1)[None, :]
        - 2.0 * qf @ protos.T, 0.0))
    logits = -d
    ly = query_y.reshape(-1)
    valid = ly != -1
    safe = jnp.where(valid, ly, 0)
    lse = jax.scipy.special.logsumexp(logits, axis=-1)
    tgt = jnp.take_along_axis(logits, safe[:, None], axis=-1)[:, 0]
    per = jnp.where(valid, lse - tgt, 0.0)
    loss = jnp.sum(per) / jnp.maximum(jnp.sum(valid.astype(jnp.float32)), 1.0)
    return loss, logits


if __name__ == "__main__":
    key = jax.random.PRNGKey(0)
    # seq=7 -> 14 flattened rows: deliberately exercises the ragged-tail masking path
    B, S, E, H, C = 2, 7, 32, 32, 4   # batch, seq, embedding, hidden, n_classes

    k1, k2, k3, k4, k5, k6 = jax.random.split(key, 6)
    w = jax.random.normal(k1, (E, H), jnp.float32) * 0.1
    b = jax.random.normal(k6, (1, H), jnp.float32) * 0.1
    params = (w, b)

    support_x = jax.random.normal(k2, (B, S, E), jnp.float32)
    query_x = jax.random.normal(k3, (B, S, E), jnp.float32)
    support_y = jax.random.randint(k4, (B, S), 0, C).astype(jnp.int32)
    query_y = jax.random.randint(k5, (B, S), 0, C).astype(jnp.int32)
    # mark last position of each sequence as padding (ignore_index=-1)
    support_y = support_y.at[:, -1].set(-1)
    query_y = query_y.at[:, -1].set(-1)

    # f32 path: tight tolerance vs reference
    loss, logits, acc = seq_vsm_episode_forward(
        params, support_x, support_y, query_x, query_y, C)
    jax.block_until_ready((loss, logits, acc))

    ref_loss, ref_logits = _reference(params, support_x, support_y, query_x, query_y, C)
    assert jnp.allclose(logits.reshape(-1, C), ref_logits, atol=1e-3, rtol=1e-3)
    assert jnp.allclose(loss, ref_loss, atol=1e-3, rtol=1e-3)

    # bf16 MXU path (v6e/v7x throughput): validated at looser tolerance
    loss_bf, logits_bf, acc_bf = seq_vsm_episode_forward(
        params, support_x, support_y, query_x, query_y, C, use_bf16=True)
    jax.block_until_ready((loss_bf, logits_bf, acc_bf))
    assert jnp.allclose(logits_bf.reshape(-1, C), ref_logits, atol=0.15, rtol=0.05)
    assert jnp.allclose(loss_bf, ref_loss, atol=0.1, rtol=0.05)

    print("KERNEL_OK")
</pallas_src>

<mosaic_0001>
module attributes {stable_mosaic.version = 11 : i64} {
  func.func @_support_proto_kernel(%arg0: i32, %arg1: memref<16x1xi32, #tpu.memory_space<vmem>>, %arg2: memref<16x32xf32, #tpu.memory_space<vmem>>, %arg3: memref<32x32xf32, #tpu.memory_space<vmem>>, %arg4: memref<1x32xf32, #tpu.memory_space<vmem>>, %arg5: memref<32x128xf32, #tpu.memory_space<vmem>>, %arg6: memref<1x128xf32, #tpu.memory_space<vmem>>, %arg7: memref<32x128xf32, #tpu.memory_space<vmem>>, %arg8: memref<1x128xf32, #tpu.memory_space<vmem>>) attributes {dimension_semantics = [#tpu.dimension_semantics<arbitrary>], iteration_bounds = array<i64: 1>, scalar_prefetch = 0 : i64, scratch_operands = 2 : i64, tpu.core_type = #tpu.core_type<tc>, window_params = [{transform_indices = @transform_0, window_bounds = array<i64: 16, 1>}, {transform_indices = @transform_1, window_bounds = array<i64: 16, 32>}, {pipeline_mode = #tpu.pipeline_mode<synchronous>, transform_indices = @transform_2, window_bounds = array<i64: 32, 32>}, {pipeline_mode = #tpu.pipeline_mode<synchronous>, transform_indices = @transform_3, window_bounds = array<i64: 1, 32>}, {pipeline_mode = #tpu.pipeline_mode<synchronous>, transform_indices = @transform_4, window_bounds = array<i64: 32, 128>}, {pipeline_mode = #tpu.pipeline_mode<synchronous>, transform_indices = @transform_5, window_bounds = array<i64: 1, 128>}]} {
    %c0_i32 = arith.constant 0 : i32
    %0 = arith.cmpi eq, %arg0, %c0_i32 : i32
    %1 = arith.extui %0 : i1 to i32
    %c0_i32_0 = arith.constant 0 : i32
    %2 = arith.cmpi ne, %1, %c0_i32_0 : i32
    scf.if %2 {
      %cst_23 = arith.constant 0.000000e+00 : f32
      %41 = vector.broadcast %cst_23 : f32 to vector<32x128xf32>
      %c0_24 = arith.constant 0 : index
      %c0_25 = arith.constant 0 : index
      %42 = vector.load %arg7[%c0_24, %c0_25] : memref<32x128xf32, #tpu.memory_space<vmem>>, vector<32x128xf32>
      tpu.vector_store %arg7[%c0_24, %c0_25], %41 {strides = array<i32>} : memref<32x128xf32, #tpu.memory_space<vmem>>, vector<32x128xf32>,
      %cst_26 = arith.constant 0.000000e+00 : f32
      %43 = vector.broadcast %cst_26 : f32 to vector<1x128xf32>
      %c0_27 = arith.constant 0 : index
      %c0_28 = arith.constant 0 : index
      %44 = vector.load %arg8[%c0_27, %c0_28] : memref<1x128xf32, #tpu.memory_space<vmem>>, vector<1x128xf32>
      tpu.vector_store %arg8[%c0_27, %c0_28], %43 {strides = array<i32>} : memref<1x128xf32, #tpu.memory_space<vmem>>, vector<1x128xf32>,
    } else {
    }
    %c0 = arith.constant 0 : index
    %c0_1 = arith.constant 0 : index
    %3 = vector.load %arg2[%c0, %c0_1] : memref<16x32xf32, #tpu.memory_space<vmem>>, vector<16x32xf32>
    %c0_2 = arith.constant 0 : index
    %c0_3 = arith.constant 0 : index
    %4 = vector.load %arg3[%c0_2, %c0_3] : memref<32x32xf32, #tpu.memory_space<vmem>>, vector<32x32xf32>
    %cst = arith.constant dense<0.000000e+00> : vector<16x32xf32>
    %5 = tpu.matmul %3, %4, %cst {dimension_numbers = #tpu.dot_dimension_numbers<[1], [0], [0], [1], [0, 0, 1, 1], [], []>} : vector<16x32xf32>, vector<32x32xf32>, vector<16x32xf32> -> vector<16x32xf32>
    %c0_4 = arith.constant 0 : index
    %c0_5 = arith.constant 0 : index
    %6 = vector.load %arg4[%c0_4, %c0_5] : memref<1x32xf32, #tpu.memory_space<vmem>>, vector<1x32xf32>
    %7 = vector.broadcast %6 : vector<1x32xf32> to vector<16x32xf32>
    %8 = arith.addf %5, %7 : vector<16x32xf32>
    %9 = math.tanh %8 : vector<16x32xf32>
    %10 = tpu.iota {dimensions = array<i32: 0>} : vector<16x1xi32>
    %c16_i32 = arith.constant 16 : i32
    %11 = arith.muli %arg0, %c16_i32 : i32
    %12 = vector.broadcast %11 : i32 to vector<16x1xi32>
    %13 = arith.addi %10, %12 : vector<16x1xi32>
    %c14_i32 = arith.constant 14 : i32
    %14 = vector.broadcast %c14_i32 : i32 to vector<16x1xi32>
    %15 = arith.cmpi slt, %13, %14 : vector<16x1xi32>
    %cst_6 = arith.constant 0.000000e+00 : f32
    %16 = vector.shape_cast %15 : vector<16x1xi1> to vector<16x1xi1>
    %17 = vector.broadcast %16 : vector<16x1xi1> to vector<16x32xi1>
    %18 = vector.broadcast %cst_6 : f32 to vector<16x32xf32>
    %19 = arith.select %17, %9, %18 : vector<16x32xi1>, vector<16x32xf32>
    %20 = tpu.iota {dimensions = array<i32: 1>} : vector<16x128xi32>
    %c0_7 = arith.constant 0 : index
    %c0_8 = arith.constant 0 : index
    %21 = vector.load %arg1[%c0_7, %c0_8] : memref<16x1xi32, #tpu.memory_space<vmem>>, vector<16x1xi32>
    %22 = vector.broadcast %21 : vector<16x1xi32> to vector<16x128xi32>
    %23 = arith.cmpi eq, %22, %20 : vector<16x128xi32>
    %24 = vector.broadcast %15 : vector<16x1xi1> to vector<16x128xi1>
    %25 = arith.andi %23, %24 : vector<16x128xi1>
    %cst_9 = arith.constant 1.000000e+00 : f32
    %cst_10 = arith.constant 0.000000e+00 : f32
    %26 = vector.broadcast %cst_9 : f32 to vector<16x128xf32>
    %27 = vector.broadcast %cst_10 : f32 to vector<16x128xf32>
    %28 = arith.select %25, %26, %27 : vector<16x128xi1>, vector<16x128xf32>
    %c0_11 = arith.constant 0 : index
    %c0_12 = arith.constant 0 : index
    %29 = vector.load %arg7[%c0_11, %c0_12] : memref<32x128xf32, #tpu.memory_space<vmem>>, vector<32x128xf32>
    %cst_13 = arith.constant dense<0.000000e+00> : vector<32x128xf32>
    %30 = tpu.matmul %19, %28, %cst_13 {dimension_numbers = #tpu.dot_dimension_numbers<[0], [0], [1], [1], [0, 1, 1, 1], [], []>} : vector<16x32xf32>, vector<16x128xf32>, vector<32x128xf32> -> vector<32x128xf32>
    %31 = arith.addf %29, %30 : vector<32x128xf32>
    %c0_14 = arith.constant 0 : index
    %c0_15 = arith.constant 0 : index
    %32 = vector.load %arg7[%c0_14, %c0_15] : memref<32x128xf32, #tpu.memory_space<vmem>>, vector<32x128xf32>
    tpu.vector_store %arg7[%c0_14, %c0_15], %31 {strides = array<i32>} : memref<32x128xf32, #tpu.memory_space<vmem>>, vector<32x128xf32>,
    %c0_16 = arith.constant 0 : index
    %c0_17 = arith.constant 0 : index
    %33 = vector.load %arg8[%c0_16, %c0_17] : memref<1x128xf32, #tpu.memory_space<vmem>>, vector<1x128xf32>
    %cst_18 = arith.constant dense<0.000000e+00> : vector<128xf32>
    %34 = vector.multi_reduction <add>, %28, %cst_18 [0] : vector<16x128xf32> to vector<128xf32>
    %35 = vector.shape_cast %34 : vector<128xf32> to vector<1x128xf32>
    %36 = arith.addf %33, %35 : vector<1x128xf32>
    %c0_19 = arith.constant 0 : index
    %c0_20 = arith.constant 0 : index
    %37 = vector.load %arg8[%c0_19, %c0_20] : memref<1x128xf32, #tpu.memory_space<vmem>>, vector<1x128xf32>
    tpu.vector_store %arg8[%c0_19, %c0_20], %36 {strides = array<i32>} : memref<1x128xf32, #tpu.memory_space<vmem>>, vector<1x128xf32>,
    %c0_i32_21 = arith.constant 0 : i32
    %38 = arith.cmpi eq, %arg0, %c0_i32_21 : i32
    %39 = arith.extui %38 : i1 to i32
    %c0_i32_22 = arith.constant 0 : i32
    %40 = arith.cmpi ne, %39, %c0_i32_22 : i32
    scf.if %40 {
      %c0_23 = arith.constant 0 : index
      %c0_24 = arith.constant 0 : index
      %41 = vector.load %arg7[%c0_23, %c0_24] : memref<32x128xf32, #tpu.memory_space<vmem>>, vector<32x128xf32>
      %c0_25 = arith.constant 0 : index
      %c0_26 = arith.constant 0 : index
      %42 = vector.load %arg8[%c0_25, %c0_26] : memref<1x128xf32, #tpu.memory_space<vmem>>, vector<1x128xf32>
      %cst_27 = arith.constant 1.000000e+00 : f32
      %43 = vector.broadcast %cst_27 : f32 to vector<1x128xf32>
      %44 = arith.maximumf %42, %43 : vector<1x128xf32>
      %45 = vector.broadcast %44 : vector<1x128xf32> to vector<32x128xf32>
      %46 = arith.divf %41, %45 : vector<32x128xf32>
      %c0_28 = arith.constant 0 : index
      %c0_29 = arith.constant 0 : index
      %47 = vector.load %arg5[%c0_28, %c0_29] : memref<32x128xf32, #tpu.memory_space<vmem>>, vector<32x128xf32>
      tpu.vector_store %arg5[%c0_28, %c0_29], %46 {strides = array<i32>} : memref<32x128xf32, #tpu.memory_space<vmem>>, vector<32x128xf32>,
      %48 = arith.mulf %46, %46 : vector<32x128xf32>
      %cst_30 = arith.constant dense<0.000000e+00> : vector<128xf32>
      %49 = vector.multi_reduction <add>, %48, %cst_30 [0] : vector<32x128xf32> to vector<128xf32>
      %50 = vector.shape_cast %49 : vector<128xf32> to vector<1x128xf32>
      %51 = tpu.iota {dimensions = array<i32: 1>} : vector<1x128xi32>
      %c4_i32 = arith.constant 4 : i32
      %52 = vector.broadcast %c4_i32 : i32 to vector<1x128xi32>
      %53 = arith.cmpi slt, %51, %52 : vector<1x128xi32>
      %cst_31 = arith.constant 1.000000e+30 : f32
      %54 = vector.broadcast %cst_31 : f32 to vector<1x128xf32>
      %55 = arith.select %53, %50, %54 : vector<1x128xi1>, vector<1x128xf32>
      %c0_32 = arith.constant 0 : index
      %c0_33 = arith.constant 0 : index
      %56 = vector.load %arg6[%c0_32, %c0_33] : memref<1x128xf32, #tpu.memory_space<vmem>>, vector<1x128xf32>
      tpu.vector_store %arg6[%c0_32, %c0_33], %55 {strides = array<i32>} : memref<1x128xf32, #tpu.memory_space<vmem>>, vector<1x128xf32>,
    } else {
    }
    return
  }
  func.func @transform_0(%arg0: i32) -> (i32, i32) {
    %c0_i32 = arith.constant 0 : i32
    %c0_i32_0 = arith.constant 0 : i32
    return %arg0, %c0_i32 : i32, i32
  }
  func.func @transform_1(%arg0: i32) -> (i32, i32) {
    %c0_i32 = arith.constant 0 : i32
    %c0_i32_0 = arith.constant 0 : i32
    return %arg0, %c0_i32 : i32, i32
  }
  func.func @transform_2(%arg0: i32) -> (i32, i32) {
    %c0_i32 = arith.constant 0 : i32
    %c0_i32_0 = arith.constant 0 : i32
    %c0_i32_1 = arith.constant 0 : i32
    return %c0_i32, %c0_i32_0 : i32, i32
  }
  func.func @transform_3(%arg0: i32) -> (i32, i32) {
    %c0_i32 = arith.constant 0 : i32
    %c0_i32_0 = arith.constant 0 : i32
    %c0_i32_1 = arith.constant 0 : i32
    return %c0_i32, %c0_i32_0 : i32, i32
  }
  func.func @transform_4(%arg0: i32) -> (i32, i32) {
    %c0_i32 = arith.constant 0 : i32
    %c0_i32_0 = arith.constant 0 : i32
    %c0_i32_1 = arith.constant 0 : i32
    return %c0_i32, %c0_i32_0 : i32, i32
  }
  func.func @transform_5(%arg0: i32) -> (i32, i32) {
    %c0_i32 = arith.constant 0 : i32
    %c0_i32_0 = arith.constant 0 : i32
    %c0_i32_1 = arith.constant 0 : i32
    return %c0_i32, %c0_i32_0 : i32, i32
  }
}

</mosaic_0001>

<llo_original>
// kernel: tpu_custom_call.1
$region0: #{tpu_custom_call.1}
  #allocation0 [shape = 'u32[]', space=smem, size = 0x4, offset = 0x4, fixed_abs, tag = 'smem constant byte address 0x4 - core index']
  #allocation1 [shape = 'u32[144,128]{1,0:T(1,128)}', space=vmem, size = 0x12000, scoped, tag = 'internal scratch']
  #allocation2 [shape = 'f32[32,128]{1,0:T(8,128)}', space=vmem, size = 0x4000, scoped, tag = 'scratch operand']
  #allocation3 [shape = 'f32[1,128]{1,0:T(1,128)}', space=vmem, size = 0x200, scoped, tag = 'scratch operand']
  %s0 = inlined_call_operand.vmem [shape: s32[14,1], index: 0, kind: input, shape index: {}]
  %s1 = inlined_call_operand.vmem [shape: f32[14,32], index: 1, kind: input, shape index: {}]
  %s2 = inlined_call_operand.hbm [shape: f32[32,32], index: 2, kind: input, shape index: {}]
  %s3 = inlined_call_operand.vmem [shape: f32[1,32], index: 3, kind: input, shape index: {}]
  %s4 = inlined_call_operand.hbm [shape: f32[32,128], index: 4, kind: output, shape index: {0}]
  %s5 = inlined_call_operand.hbm [shape: f32[1,128], index: 5, kind: output, shape index: {1}]
  %6 = xla_tuple %s4, %s5
  %s7 = sld [smem:[#allocation0]]
  $region46: #{tpu_custom_call.1} parent=0
    _
  %s9 = ssub.s32 1, %s7
  %s10 = scalar_select 0, %s9, %s7
  $region1: #{tpu_custom_call.1} parent=0
    #allocation4 [shape = 'u8[16384]{0}', space=vmem, size = 0x4000, scoped, tag = 'input window, operand 2, single buffered']
    #allocation5 [shape = 's32[1]{0}', space=sflag, size = 0x4, scoped, tag = 'scoped memory for tpu_custom_call.1']
    #allocation6 [shape = 's32[1]{0}', space=sflag, size = 0x4, scoped, tag = 'scoped memory for tpu_custom_call.1']
    #allocation7 [shape = 'u8[16384]{0}', space=vmem, size = 0x4000, scoped, tag = 'output window, operand 0, single buffered']
    #allocation8 [shape = 'u8[512]{0}', space=vmem, size = 0x400, scoped, tag = 'output window, operand 1, single buffered']
    #allocation9 [shape = 's32[1]{0}', space=sflag, size = 0x4, scoped, tag = 'scoped memory for tpu_custom_call.1']
    %11 = vsyncpa [#allocation5], 0
    %12 = vsyncpa [#allocation6], 0
    %13 = vsyncpa [#allocation9], 0
    // Predicated region
    $region2: #{tpu_custom_call.1} parent=1 // pred_check
      _
    $region3: #{tpu_custom_call.1} parent=1 // pred_check_branch
      %15 = sbr.rel (0) target = $region5
    $region4: #{tpu_custom_call.1} parent=1 // pred_region
      _
    $region5: #{tpu_custom_call.1} parent=1 // pred_fallthru
      _
    // Predicated region
    $region6: #{tpu_custom_call.1} parent=1 // pred_check
      _
    $region7: #{tpu_custom_call.1} parent=1 // pred_check_branch
      %17 = sbr.rel (0) target = $region9
    $region8: #{tpu_custom_call.1} parent=1 // pred_region
      _
    $region9: #{tpu_custom_call.1} parent=1 // pred_fallthru
      _
    // Predicated region
    $region10: #{tpu_custom_call.1} parent=1 // pred_check
      _
    $region11: #{tpu_custom_call.1} parent=1 // pred_check_branch
      %19 = sbr.rel (0) target = $region13
    $region12: #{tpu_custom_call.1} parent=1 // pred_region
      %s21 = ssub.s32 512, 512
      %22 = vsyncadd [#allocation5], %s21
      %s23 = sshll.u32 [#allocation4], 4
      %s24 = int_to_ptr.vmem [resolvable:$true] %s23
      %29 = dma.hbm_to_vmem [thread:$0]  %s2, 512, %s24, [#allocation5], 128, 128, 8
    $region13: #{tpu_custom_call.1} parent=1 // pred_fallthru
      _
    // Predicated region
    $region14: #{tpu_custom_call.1} parent=1 // pred_check
      _
    $region15: #{tpu_custom_call.1} parent=1 // pred_check_branch
      %31 = sbr.rel (0) target = $region17
    $region16: #{tpu_custom_call.1} parent=1 // pred_region
      _
    $region17: #{tpu_custom_call.1} parent=1 // pred_fallthru
      _
    // Predicated region
    $region18: #{tpu_custom_call.1} parent=1 // pred_check
      _
    $region19: #{tpu_custom_call.1} parent=1 // pred_check_branch
      %33 = sbr.rel (0) target = $region21
    $region20: #{tpu_custom_call.1} parent=1 // pred_region
      %34 = dma.done [#allocation5], 512
    $region21: #{tpu_custom_call.1} parent=1 // pred_fallthru
      _
    %p35 = scmp.eq.s32.totalorder 0, 0
    // Predicated region
    $region22: #{tpu_custom_call.1} parent=1 // pred_check
      %p36 = pneg %p35
    $region23: #{tpu_custom_call.1} parent=1 // pred_check_branch
      %38 = sbr.rel (%p36) target = $region25
    $region24: #{tpu_custom_call.1} parent=1 // pred_region
      %39 = vst [vmem:[#allocation2] sm:$0xff] 0.0
      %40 = vst [vmem:[#allocation2 + $0x8] sm:$0xff] 0.0
      %41 = vst [vmem:[#allocation2 + $0x10] sm:$0xff] 0.0
      %42 = vst [vmem:[#allocation2 + $0x18] sm:$0xff] 0.0
      %43 = vst [vmem:[#allocation3] sm:$0x1] 0.0
    $region25: #{tpu_custom_call.1} parent=1 // pred_fallthru
      _
    %v44 = vld [vmem:[%s1] sm:$0xff]
    %v45 = vld [vmem:[%s1 + $0x8] sm:$0xff]
    %v46 = vld [vmem:[#allocation4] sm:$0xff]
    %v47 = vld [vmem:[#allocation4 + $0x8] sm:$0xff]
    %v48 = vld [vmem:[#allocation4 + $0x10] sm:$0xff]
    %v49 = vld [vmem:[#allocation4 + $0x18] sm:$0xff]
    %v50 = vld [vmem:[%s3] sm:$0x1]
    %v52 = vlaneseq
    %v53 = vshrl.u32 %v52, 7
    %v54 = vsub.s32 0, %v53
    %v55 = vrot.slane %v50, %v54
    %vm57 = vcmask 261120
    %v59 = vsel %vm57, %v44, 0
    %v62 = vsel %vm57, %v45, 0
    %64 = vmatprep.subr.mxu0 0.0
    %65 = vmatpush1.msra.mxu0 %v46
    %66 = vmatprep.subr.mxu0 0.0
    %67 = vmatpush1.msra.mxu0 %v47
    %68 = vmatprep.subr.mxu0 0.0
    %69 = vmatpush1.msra.mxu0 %v48
    %70 = vmatprep.subr.mxu0 0.0
    %71 = vmatpush1.msra.mxu0 %v49
    %72 = vmatprep.subr.mxu0 0.0
    %73 = vmatpush1.msra.mxu0 0.0
    %74 = vmatprep.subr.mxu0 0.0
    %75 = vmatpush1.msra.mxu0 0.0
    %76 = vmatprep.subr.mxu0 0.0
    %77 = vmatpush1.msra.mxu0 0.0
    %78 = vmatprep.subr.mxu0 0.0
    %79 = vmatpush1.msra.mxu0 0.0
    %80 = vmatprep.subr.mxu0 0.0
    %81 = vmatpush1.msra.mxu0 0.0
    %82 = vmatprep.subr.mxu0 0.0
    %83 = vmatpush1.msra.mxu0 0.0
    %84 = vmatprep.subr.mxu0 0.0
    %85 = vmatpush1.msra.mxu0 0.0
    %86 = vmatprep.subr.mxu0 0.0
    %87 = vmatpush1.msra.mxu0 0.0
    %88 = vmatprep.subr.mxu0 0.0
    %89 = vmatpush1.msra.mxu0 0.0
    %90 = vmatprep.subr.mxu0 0.0
    %91 = vmatpush1.msra.mxu0 0.0
    %92 = vmatprep.subr.mxu0 0.0
    %93 = vmatpush1.msra.mxu0 0.0
    %94 = vmatprep.subr.mxu0 0.0
    %95 = vmatpush1.msra.mxu0 0.0
    %96 = vmatprep.subr.mxu0 0.0
    %97 = vmatpush1.msra.mxu0 0.0
    %98 = vmatprep.subr.mxu0 0.0
    %99 = vmatpush1.msra.mxu0 0.0
    %100 = vmatprep.subr.mxu0 0.0
    %101 = vmatpush1.msra.mxu0 0.0
    %102 = vmatprep.subr.mxu0 0.0
    %103 = vmatpush1.msra.mxu0 0.0
    %104 = vmatprep.subr.mxu0 0.0
    %105 = vmatpush1.msra.mxu0 0.0
    %106 = vmatprep.subr.mxu0 0.0
    %107 = vmatpush1.msra.mxu0 0.0
    %108 = vmatprep.subr.mxu0 0.0
    %109 = vmatpush1.msra.mxu0 0.0
    %110 = vmatprep.subr.mxu0 0.0
    %111 = vmatpush1.msra.mxu0 0.0
    %112 = vmatprep.subr.mxu0 0.0
    %113 = vmatpush1.msra.mxu0 0.0
    %114 = vmatprep.subr.mxu0 0.0
    %115 = vmatpush1.msra.mxu0 0.0
    %116 = vmatprep.subr.mxu0 0.0
    %117 = vmatpush1.msra.mxu0 0.0
    %118 = vmatprep.subr.mxu0 0.0
    %119 = vmatpush1.msra.mxu0 0.0
    %120 = vmatprep.subr.mxu0 0.0
    %121 = vmatpush1.msra.mxu0 0.0
    %122 = vmatprep.subr.mxu0 0.0
    %123 = vmatpush1.msra.mxu0 0.0
    %124 = vmatprep.subr.mxu0 0.0
    %125 = vmatpush1.msra.mxu0 0.0
    %126 = vmatprep.subr.mxu0 0.0
    %127 = vmatpush1.msra.mxu0 0.0
    %128 = vmatprep.mubr.f32.mxu0 0.0
    %129 = vmatmul.mubr.f32.gmra.mrb[0].mxu0 %v59
    %v130 = vpop.f32.mrb[0].mxu0
    %v131 = vadd.f32 %v55, %v130
    %v132 = vpop.f32.mrb[0].mxu0
    %133 = vmatprep.mubr.f32.mxu0 0.0
    %134 = vmatmul.mubr.f32.gmra.mrb[0].mxu0 %v62
    %v135 = vpop.f32.mrb[0].mxu0
    %v136 = vadd.f32 %v55, %v135
    %v137 = vpop.f32.mrb[0].mxu0
    %138 = vdwg.mxu0
    %v139 = vtanh.pop %v131
    %v140 = vtanh.pop %v136
    %v141 = vlaneseq
    %v142 = vshrl.u32 %v141, 7
    %v143 = vadd.s32 %v142, 8
    %s144 = smul.u32 0, 16
    %v145 = vstv %s144
    %v146 = vadd.s32 %v142, %v145
    %v147 = vadd.s32 %v143, %v145
    %vm148 = vcmp.lt.s32.totalorder %v146, 14
    %vm149 = vcmp.lt.s32.totalorder %v147, 14
    %v150 = vsel %vm148, 1, 0
    %v151 = vsel %vm149, 1, 0
    %vm152 = vcmp.eq.s32.totalorder %v150, 1
    %vm153 = vcmp.eq.s32.totalorder %v151, 1
    %v154 = vsel %vm152, %v139, 0.0
    %v155 = vsel %vm153, %v140, 0.0
    %v156 = vlaneseq
    %v157 = vand.u32 %v156, 127
    %v158 = vld [vmem:[%s0] sm:$0xff]
    %v159 = vld [vmem:[%s0 + $0x8] sm:$0xff]
    %160 = vset.pattern.permute.xlu0 0
    %161 = vperm.xlu0 %160, %v158
    %v162 = vpop.permute.xlu0 %161
    %163 = vset.pattern.permute.xlu0 0
    %164 = vperm.xlu0 %163, %v159
    %v165 = vpop.permute.xlu0 %164
    %vm166 = vcmp.eq.s32.totalorder %v162, %v157
    %vm167 = vcmp.eq.s32.totalorder %v165, %v157
    %vm168 = vmand %vm166, %vm152
    %vm169 = vmand %vm167, %vm153
    %v170 = vsel %vm168, 1.0, 0.0
    %v171 = vsel %vm169, 1.0, 0.0
    %v172 = vld [vmem:[#allocation2] sm:$0xff]
    %v173 = vld [vmem:[#allocation2 + $0x8] sm:$0xff]
    %v174 = vld [vmem:[#allocation2 + $0x10] sm:$0xff]
    %v175 = vld [vmem:[#allocation2 + $0x18] sm:$0xff]
    %176 = vxpose.xlu0.b32.start [1/16] %v154, 128
    %177 = vxpose.xlu0.b32.cont [2/16] %v155, 128
    %178 = vxpose.xlu0.b32.cont [3/16] 0.0, 128
    %179 = vxpose.xlu0.b32.cont [4/16] 0.0, 128
    %180 = vxpose.xlu0.b32.cont [5/16] 0.0, 128
    %181 = vxpose.xlu0.b32.cont [6/16] 0.0, 128
    %182 = vxpose.xlu0.b32.cont [7/16] 0.0, 128
    %183 = vxpose.xlu0.b32.cont [8/16] 0.0, 128
    %184 = vxpose.xlu0.b32.cont [9/16] 0.0, 128
    %185 = vxpose.xlu0.b32.cont [10/16] 0.0, 128
    %186 = vxpose.xlu0.b32.cont [11/16] 0.0, 128
    %187 = vxpose.xlu0.b32.cont [12/16] 0.0, 128
    %188 = vxpose.xlu0.b32.cont [13/16] 0.0, 128
    %189 = vxpose.xlu0.b32.cont [14/16] 0.0, 128
    %190 = vxpose.xlu0.b32.cont [15/16] 0.0, 128
    %191 = vxpose.xlu0.b32.end [16/16] 0.0, 128
    %v192 = vpop.trf.xlu0
    %v193 = vpop.trf.xlu0
    %v194 = vpop.trf.xlu0
    %v195 = vpop.trf.xlu0
    %v196 = vpop.trf.xlu0
    %v197 = vpop.trf.xlu0
    %v198 = vpop.trf.xlu0
    %v199 = vpop.trf.xlu0
    %v200 = vpop.trf.xlu0
    %v201 = vpop.trf.xlu0
    %v202 = vpop.trf.xlu0
    %v203 = vpop.trf.xlu0
    %v204 = vpop.trf.xlu0
    %v205 = vpop.trf.xlu0
    %v206 = vpop.trf.xlu0
    %v207 = vpop.trf.xlu0
    %vm208 = vcmask 130048
    %v210 = vsel %vm208, %v192, 0
    %v213 = vsel %vm208, %v193, 0
    %v216 = vsel %vm208, %v194, 0
    %v219 = vsel %vm208, %v195, 0
    %221 = vmatprep.subr.mxu0 0.0
    %222 = vmatpush1.msra.mxu0 %v170
    %223 = vmatprep.subr.mxu0 0.0
    %224 = vmatpush1.msra.mxu0 %v171
    %225 = vmatprep.subr.mxu0 0.0
    %226 = vmatpush1.msra.mxu0 0.0
    %227 = vmatprep.subr.mxu0 0.0
    %228 = vmatpush1.msra.mxu0 0.0
    %229 = vmatprep.subr.mxu0 0.0
    %230 = vmatpush1.msra.mxu0 0.0
    %231 = vmatprep.subr.mxu0 0.0
    %232 = vmatpush1.msra.mxu0 0.0
    %233 = vmatprep.subr.mxu0 0.0
    %234 = vmatpush1.msra.mxu0 0.0
    %235 = vmatprep.subr.mxu0 0.0
    %236 = vmatpush1.msra.mxu0 0.0
    %237 = vmatprep.subr.mxu0 0.0
    %238 = vmatpush1.msra.mxu0 0.0
    %239 = vmatprep.subr.mxu0 0.0
    %240 = vmatpush1.msra.mxu0 0.0
    %241 = vmatprep.subr.mxu0 0.0
    %242 = vmatpush1.msra.mxu0 0.0
    %243 = vmatprep.subr.mxu0 0.0
    %244 = vmatpush1.msra.mxu0 0.0
    %245 = vmatprep.subr.mxu0 0.0
    %246 = vmatpush1.msra.mxu0 0.0
    %247 = vmatprep.subr.mxu0 0.0
    %248 = vmatpush1.msra.mxu0 0.0
    %249 = vmatprep.subr.mxu0 0.0
    %250 = vmatpush1.msra.mxu0 0.0
    %251 = vmatprep.subr.mxu0 0.0
    %252 = vmatpush1.msra.mxu0 0.0
    %253 = vmatprep.subr.mxu0 0.0
    %254 = vmatpush1.msra.mxu0 0.0
    %255 = vmatprep.subr.mxu0 0.0
    %256 = vmatpush1.msra.mxu0 0.0
    %257 = vmatprep.subr.mxu0 0.0
    %258 = vmatpush1.msra.mxu0 0.0
    %259 = vmatprep.subr.mxu0 0.0
    %260 = vmatpush1.msra.mxu0 0.0
    %261 = vmatprep.subr.mxu0 0.0
    %262 = vmatpush1.msra.mxu0 0.0
    %263 = vmatprep.subr.mxu0 0.0
    %264 = vmatpush1.msra.mxu0 0.0
    %265 = vmatprep.subr.mxu0 0.0
    %266 = vmatpush1.msra.mxu0 0.0
    %267 = vmatprep.subr.mxu0 0.0
    %268 = vmatpush1.msra.mxu0 0.0
    %269 = vmatprep.subr.mxu0 0.0
    %270 = vmatpush1.msra.mxu0 0.0
    %271 = vmatprep.subr.mxu0 0.0
    %272 = vmatpush1.msra.mxu0 0.0
    %273 = vmatprep.subr.mxu0 0.0
    %274 = vmatpush1.msra.mxu0 0.0
    %275 = vmatprep.subr.mxu0 0.0
    %276 = vmatpush1.msra.mxu0 0.0
    %277 = vmatprep.subr.mxu0 0.0
    %278 = vmatpush1.msra.mxu0 0.0
    %279 = vmatprep.subr.mxu0 0.0
    %280 = vmatpush1.msra.mxu0 0.0
    %281 = vmatprep.subr.mxu0 0.0
    %282 = vmatpush1.msra.mxu0 0.0
    %283 = vmatprep.subr.mxu0 0.0
    %284 = vmatpush1.msra.mxu0 0.0
    %285 = vmatprep.mubr.f32.mxu0 0.0
    %286 = vmatmul.mubr.f32.gmra.mrb[0].mxu0 %v210
    %v287 = vpop.f32.mrb[0].mxu0
    %v288 = vadd.f32 0.0, %v287
    %v289 = vpop.f32.mrb[0].mxu0
    %290 = vmatprep.mubr.f32.mxu0 0.0
    %291 = vmatmul.mubr.f32.gmra.mrb[0].mxu0 %v213
    %v292 = vpop.f32.mrb[0].mxu0
    %v293 = vadd.f32 0.0, %v292
    %v294 = vpop.f32.mrb[0].mxu0
    %295 = vmatprep.mubr.f32.mxu0 0.0
    %296 = vmatmul.mubr.f32.gmra.mrb[0].mxu0 %v216
    %v297 = vpop.f32.mrb[0].mxu0
    %v298 = vadd.f32 0.0, %v297
    %v299 = vpop.f32.mrb[0].mxu0
    %300 = vmatprep.mubr.f32.mxu0 0.0
    %301 = vmatmul.mubr.f32.gmra.mrb[0].mxu0 %v219
    %v302 = vpop.f32.mrb[0].mxu0
    %v303 = vadd.f32 0.0, %v302
    %v304 = vpop.f32.mrb[0].mxu0
    %305 = vdwg.mxu0
    %v306 = vadd.f32 %v172, %v288
    %v307 = vadd.f32 %v173, %v293
    %v308 = vadd.f32 %v174, %v298
    %v309 = vadd.f32 %v175, %v303
    %310 = vst [vmem:[#allocation2] sm:$0xff] %v306
    %311 = vst [vmem:[#allocation2 + $0x8] sm:$0xff] %v307
    %312 = vst [vmem:[#allocation2 + $0x10] sm:$0xff] %v308
    %313 = vst [vmem:[#allocation2 + $0x18] sm:$0xff] %v309
    %v314 = vld [vmem:[#allocation3] sm:$0x1]
    %v315 = vadd.f32 %v170, %v171
    %v316 = vrot.slane %v315, 4
    %v317 = vadd.f32 %v315, %v316
    %v318 = vrot.slane %v317, 2
    %v319 = vadd.f32 %v317, %v318
    %v320 = vrot.slane %v319, 1
    %v321 = vadd.f32 %v319, %v320
    %v322 = vadd.f32 %v314, %v321
    %323 = vst [vmem:[#allocation3] sm:$0x1] %v322
    // Predicated region
    $region26: #{tpu_custom_call.1} parent=1 // pred_check
      %p324 = pneg %p35
    $region27: #{tpu_custom_call.1} parent=1 // pred_check_branch
      %326 = sbr.rel (%p324) target = $region29
    $region28: #{tpu_custom_call.1} parent=1 // pred_region
      %v327 = vld [vmem:[#allocation2] sm:$0xff]
      %v328 = vld [vmem:[#allocation2 + $0x8] sm:$0xff]
      %v329 = vld [vmem:[#allocation2 + $0x10] sm:$0xff]
      %v330 = vld [vmem:[#allocation2 + $0x18] sm:$0xff]
      %v331 = vld [vmem:[#allocation3] sm:$0x1]
      %v332 = vmax.f32 %v331, 1.0
      %v334 = vlaneseq
      %v335 = vshrl.u32 %v334, 7
      %v336 = vsub.s32 0, %v335
      %v337 = vrot.slane %v332, %v336
      %v339 = vrcp.pop %v337
      %v340 = vmul.f32 %v327, %v339
      %v341 = vmul.f32 %v328, %v339
      %v342 = vmul.f32 %v329, %v339
      %v343 = vmul.f32 %v330, %v339
      %344 = vst [vmem:[#allocation7] sm:$0xff] %v340
      %345 = vst [vmem:[#allocation7 + $0x8] sm:$0xff] %v341
      %346 = vst [vmem:[#allocation7 + $0x10] sm:$0xff] %v342
      %347 = vst [vmem:[#allocation7 + $0x18] sm:$0xff] %v343
      %v348 = vmul.f32 %v340, %v340
      %v349 = vmul.f32 %v341, %v341
      %v350 = vmul.f32 %v342, %v342
      %v351 = vmul.f32 %v343, %v343
      %v352 = vadd.f32 %v348, %v349
      %v353 = vadd.f32 %v352, %v350
      %v354 = vadd.f32 %v353, %v351
      %v355 = vrot.slane %v354, 4
      %v356 = vadd.f32 %v354, %v355
      %v357 = vrot.slane %v356, 2
      %v358 = vadd.f32 %v356, %v357
      %v359 = vrot.slane %v358, 1
      %v360 = vadd.f32 %v358, %v359
      %vm361 = vcmp.lt.s32.totalorder %v157, 4
      %v362 = vsel %vm361, %v360, 1e+30
      %363 = vst [vmem:[#allocation8] sm:$0x1] %v362
    $region29: #{tpu_custom_call.1} parent=1 // pred_fallthru
      _
    // Predicated region
    $region30: #{tpu_custom_call.1} parent=1 // pred_check
      _
    $region31: #{tpu_custom_call.1} parent=1 // pred_check_branch
      %365 = sbr.rel (0) target = $region33
    $region32: #{tpu_custom_call.1} parent=1 // pred_region
      %s367 = ssub.s32 512, 512
      %368 = vsyncadd [#allocation6], %s367
      %s369 = sshll.u32 [#allocation7], 4
      %s370 = int_to_ptr.vmem [resolvable:$true] %s369
      %375 = dma.vmem_to_hbm [thread:$0]  %s370, 512, %s4, [#allocation6], 128, 128, 8
    $region33: #{tpu_custom_call.1} parent=1 // pred_fallthru
      _
    // Predicated region
    $region34: #{tpu_custom_call.1} parent=1 // pred_check
      _
    $region35: #{tpu_custom_call.1} parent=1 // pred_check_branch
      %377 = sbr.rel (0) target = $region37
    $region36: #{tpu_custom_call.1} parent=1 // pred_region
      %s379 = ssub.s32 16, 16
      %380 = vsyncadd [#allocation9], %s379
      %s382 = sshll.u32 [#allocation8], 4
      %s383 = int_to_ptr.vmem [resolvable:$true] %s382
      %385 = dma.vmem_to_hbm [thread:$0]  %s383, 16, %s5, [#allocation9]
    $region37: #{tpu_custom_call.1} parent=1 // pred_fallthru
      _
    // Predicated region
    $region38: #{tpu_custom_call.1} parent=1 // pred_check
      _
    $region39: #{tpu_custom_call.1} parent=1 // pred_check_branch
      %387 = sbr.rel (0) target = $region41
    $region40: #{tpu_custom_call.1} parent=1 // pred_region
      %388 = dma.done [#allocation6], 512
    $region41: #{tpu_custom_call.1} parent=1 // pred_fallthru
      _
    // Predicated region
    $region42: #{tpu_custom_call.1} parent=1 // pred_check
      _
    $region43: #{tpu_custom_call.1} parent=1 // pred_check_branch
      %390 = sbr.rel (0) target = $region45
    $region44: #{tpu_custom_call.1} parent=1 // pred_region
      %391 = dma.done [#allocation9], 16
    $region45: #{tpu_custom_call.1} parent=1 // pred_fallthru
      _
    %392 = vsyncpa [#allocation5], 1
    %393 = vsyncpa [#allocation6], 1
    %394 = vsyncpa [#allocation9], 1

</llo_original>
